<compile_context>
chip_gen: v5e
topology: v5e:2x2
jax: 0.10.0
libtpu: 0.0.40
codegen_flags: <defaults>
</compile_context>

<pallas_src>
import jax
import jax.numpy as jnp
from jax.experimental import pallas as pl
from jax.experimental.pallas import tpu as pltpu

LANE = 128
_TARGET_TILE_BYTES = 4 * 1024 * 1024  # ~4 MiB per pipeline buffer (in+out, x2 buffers = 16 MiB VMEM)


def _temperature_kernel(inv_t_ref, x_ref, o_ref):
    # inv_t_ref: (1,) f32 scalar in SMEM; x_ref/o_ref: (tile_r, 128) VMEM tile.
    inv_t = inv_t_ref[0]
    # Multiply in f32 (matches the reference x / temp precision for f32 inputs),
    # then cast back so the store stays an unmasked native-dtype vst.
    o_ref[...] = (x_ref[...] * inv_t).astype(o_ref.dtype)


def _sublane_for_dtype(dtype):
    # Sub-32-bit dtypes pack 16/32 rows per sublane tile.
    itemsize = jnp.dtype(dtype).itemsize
    return {4: 8, 2: 16, 1: 32}.get(itemsize, 8)


def temperature_forward(x, temp):
    """y = x / temp, elementwise. x: any shape, temp: scalar parameter."""
    orig_shape = x.shape
    orig_dtype = x.dtype
    total = x.size
    if total == 0:
        return x

    itemsize = jnp.dtype(orig_dtype).itemsize
    sublane = _sublane_for_dtype(orig_dtype)

    # Flatten to a lane-dense (rows, 128) slab.  Only pad (one cheap HBM copy)
    # when the element count is not already a multiple of 128 -- the common
    # aligned case pays nothing extra.
    x_flat = jnp.reshape(x, (-1,))
    need_pad = total % LANE != 0
    if need_pad:
        pad = (-total) % (sublane * LANE)
        x_flat = jnp.pad(x_flat, (0, pad))
    rows = x_flat.size // LANE
    x2d = jnp.reshape(x_flat, (rows, LANE))

    # Tile rows so each pipeline buffer is ~4 MiB (2 operands x 2 buffers
    # = 16 MiB, well under every generation's scoped VMEM).  A ragged last
    # block is handled by Pallas block masking (grid = cdiv), no extra padding.
    max_tile_r = max(1, _TARGET_TILE_BYTES // (LANE * itemsize))
    if rows <= max_tile_r:
        tile_r = rows  # single block == full array dims (always legal)
    else:
        tile_r = max(sublane, (max_tile_r // sublane) * sublane)
    grid = (pl.cdiv(rows, tile_r),)

    # Scalar 1/temp computed once in f32, passed via SMEM (division -> multiply).
    inv_t = (1.0 / jnp.asarray(temp, dtype=jnp.float32)).reshape((1,))

    y2d = pl.pallas_call(
        _temperature_kernel,
        out_shape=jax.ShapeDtypeStruct((rows, LANE), orig_dtype),
        grid_spec=pltpu.PrefetchScalarGridSpec(
            num_scalar_prefetch=0,
            grid=grid,
            in_specs=[
                pl.BlockSpec(memory_space=pltpu.SMEM),           # 1/temp scalar
                pl.BlockSpec((tile_r, LANE), lambda i: (i, 0)),  # x tile
            ],
            out_specs=pl.BlockSpec((tile_r, LANE), lambda i: (i, 0)),
        ),
        compiler_params=pltpu.CompilerParams(
            dimension_semantics=("parallel",),
            vmem_limit_bytes=32 * 1024 * 1024,
        ),
    )(inv_t, x2d)

    y_flat = jnp.reshape(y2d, (-1,))
    if need_pad:
        y_flat = y_flat[:total]
    return jnp.reshape(y_flat, orig_shape)


if __name__ == "__main__":
    # Deterministic parameter init, matching nn.Parameter(torch.tensor(1.5)).
    temp = jnp.float32(1.5)

    key = jax.random.PRNGKey(0)
    x = jax.random.normal(key, (2, 4, 16, 16), dtype=jnp.float32)  # NCHW

    y = temperature_forward(x, temp)
    y = jax.block_until_ready(y)

    # Reference check in plain JAX.
    y_ref = x / temp
    assert y.shape == x.shape
    assert y.dtype == x.dtype
    assert jnp.allclose(y, y_ref, atol=1e-6, rtol=1e-6), "mismatch vs reference"

    print("KERNEL_OK")
</pallas_src>

<mosaic_0001>
module attributes {stable_mosaic.version = 11 : i64} {
  func.func @_temperature_kernel(%arg0: i32, %arg1: memref<1xf32, #tpu.memory_space<smem>>, %arg2: memref<16x128xf32, #tpu.memory_space<vmem>>, %arg3: memref<16x128xf32, #tpu.memory_space<vmem>>) attributes {dimension_semantics = [#tpu.dimension_semantics<parallel>], iteration_bounds = array<i64: 1>, scalar_prefetch = 0 : i64, scratch_operands = 0 : i64, tpu.core_type = #tpu.core_type<tc>, window_params = [{transform_indices = @transform_0, window_bounds = array<i64: 1>}, {transform_indices = @transform_1, window_bounds = array<i64: 16, 128>}, {transform_indices = @transform_2, window_bounds = array<i64: 16, 128>}]} {
    %c0 = arith.constant 0 : index
    %0 = memref.load %arg1[%c0] : memref<1xf32, #tpu.memory_space<smem>>
    %c0_0 = arith.constant 0 : index
    %c0_1 = arith.constant 0 : index
    %1 = vector.load %arg2[%c0_0, %c0_1] : memref<16x128xf32, #tpu.memory_space<vmem>>, vector<16x128xf32>
    %2 = vector.broadcast %0 : f32 to vector<16x128xf32>
    %3 = arith.mulf %1, %2 : vector<16x128xf32>
    %c0_2 = arith.constant 0 : index
    %c0_3 = arith.constant 0 : index
    %4 = vector.load %arg3[%c0_2, %c0_3] : memref<16x128xf32, #tpu.memory_space<vmem>>, vector<16x128xf32>
    tpu.vector_store %arg3[%c0_2, %c0_3], %3 {strides = array<i32>} : memref<16x128xf32, #tpu.memory_space<vmem>>, vector<16x128xf32>,
    return
  }
  func.func @transform_0(%arg0: i32) -> i32 {
    %c0_i32 = arith.constant 0 : i32
    %c0_i32_0 = arith.constant 0 : i32
    return %c0_i32 : i32
  }
  func.func @transform_1(%arg0: i32) -> (i32, i32) {
    %c0_i32 = arith.constant 0 : i32
    %c0_i32_0 = arith.constant 0 : i32
    return %arg0, %c0_i32 : i32, i32
  }
  func.func @transform_2(%arg0: i32) -> (i32, i32) {
    %c0_i32 = arith.constant 0 : i32
    %c0_i32_0 = arith.constant 0 : i32
    return %arg0, %c0_i32 : i32, i32
  }
}

</mosaic_0001>

<llo_original>
// kernel: tpu_custom_call.1
$region0: #{tpu_custom_call.1}
  #allocation0 [shape = 'u32[]', space=smem, size = 0x4, offset = 0x4, fixed_abs, tag = 'smem constant byte address 0x4 - core index']
  #allocation1 [shape = 'u32[72,128]{1,0:T(1,128)}', space=vmem, size = 0x9000, scoped, tag = 'internal scratch']
  #allocation2 [shape = 'f32[1]{0:T(128)S(6)}', space=smem, size = 0x200, scoped, tag = 'scoped memory for tpu_custom_call.1']
  %s0 = inlined_call_operand.<no memory space> [shape: f32[1], index: 0, kind: input, shape index: {}]
  %s1 = inlined_call_operand.hbm [shape: f32[16,128], index: 1, kind: input, shape index: {}]
  %s2 = inlined_call_operand.hbm [shape: f32[16,128], index: 2, kind: output, shape index: {}]
  %s3 = sld [smem:[#allocation0]]
  $region22: #{tpu_custom_call.1} parent=0
    _
  %s5 = ssub.s32 1, %s3
  %s6 = scalar_select 0, %s5, %s3
  %7 = sst [smem:[#allocation2]] %s0
  $region1: #{tpu_custom_call.1} parent=0
    #allocation3 [shape = 'u8[8192]{0}', space=vmem, size = 0x2000, scoped, tag = 'input window, operand 1, single buffered']
    #allocation4 [shape = 's32[1]{0}', space=sflag, size = 0x4, scoped, tag = 'scoped memory for tpu_custom_call.1']
    #allocation5 [shape = 's32[1]{0}', space=sflag, size = 0x4, scoped, tag = 'scoped memory for tpu_custom_call.1']
    #allocation6 [shape = 'u8[8192]{0}', space=vmem, size = 0x2000, scoped, tag = 'output window, operand 0, single buffered']
    %8 = vsyncpa [#allocation4], 0
    %9 = vsyncpa [#allocation5], 0
    // Predicated region
    $region2: #{tpu_custom_call.1} parent=1 // pred_check
      _
    $region3: #{tpu_custom_call.1} parent=1 // pred_check_branch
      %11 = sbr.rel (0) target = $region5
    $region4: #{tpu_custom_call.1} parent=1 // pred_region
      _
    $region5: #{tpu_custom_call.1} parent=1 // pred_fallthru
      _
    // Predicated region
    $region6: #{tpu_custom_call.1} parent=1 // pred_check
      _
    $region7: #{tpu_custom_call.1} parent=1 // pred_check_branch
      %13 = sbr.rel (0) target = $region9
    $region8: #{tpu_custom_call.1} parent=1 // pred_region
      %15 = vsyncadd [#allocation4], 0
      %s16 = sshll.u32 %s1, 4
      %s17 = int_to_ptr.hbm [resolvable:$true] %s16
      %s18 = sshll.u32 [#allocation3], 4
      %s19 = int_to_ptr.vmem [resolvable:$true] %s18
      %24 = dma.hbm_to_vmem [thread:$0]  %s17, 256, %s19, [#allocation4], 128, 128, 8
    $region9: #{tpu_custom_call.1} parent=1 // pred_fallthru
      _
    // Predicated region
    $region10: #{tpu_custom_call.1} parent=1 // pred_check
      _
    $region11: #{tpu_custom_call.1} parent=1 // pred_check_branch
      %26 = sbr.rel (0) target = $region13
    $region12: #{tpu_custom_call.1} parent=1 // pred_region
      %28 = dma.done [#allocation4], 256
    $region13: #{tpu_custom_call.1} parent=1 // pred_fallthru
      _
    %s29 = sld [smem:[#allocation2]]
    %v30 = vld [vmem:[#allocation3] sm:$0xff]
    %v31 = vld [vmem:[#allocation3 + $0x8] sm:$0xff]
    %v32 = vstv %s29
    %v33 = vmul.f32 %v30, %v32
    %v34 = vmul.f32 %v31, %v32
    %35 = vst [vmem:[#allocation6] sm:$0xff] %v33
    %36 = vst [vmem:[#allocation6 + $0x8] sm:$0xff] %v34
    // Predicated region
    $region14: #{tpu_custom_call.1} parent=1 // pred_check
      _
    $region15: #{tpu_custom_call.1} parent=1 // pred_check_branch
      %38 = sbr.rel (0) target = $region17
    $region16: #{tpu_custom_call.1} parent=1 // pred_region
      %40 = vsyncadd [#allocation5], 0
      %s41 = sshll.u32 [#allocation6], 4
      %s42 = int_to_ptr.vmem [resolvable:$true] %s41
      %s43 = sshll.u32 %s2, 4
      %s44 = int_to_ptr.hbm [resolvable:$true] %s43
      %49 = dma.vmem_to_hbm [thread:$0]  %s42, 256, %s44, [#allocation5], 128, 128, 8
    $region17: #{tpu_custom_call.1} parent=1 // pred_fallthru
      _
    // Predicated region
    $region18: #{tpu_custom_call.1} parent=1 // pred_check
      _
    $region19: #{tpu_custom_call.1} parent=1 // pred_check_branch
      %51 = sbr.rel (0) target = $region21
    $region20: #{tpu_custom_call.1} parent=1 // pred_region
      %53 = dma.done [#allocation5], 256
    $region21: #{tpu_custom_call.1} parent=1 // pred_fallthru
      _
    %54 = vsyncpa [#allocation4], 1
    %55 = vsyncpa [#allocation5], 1

</llo_original>
